<compile_context>
chip_gen: v7x
topology: tpu7x:2x2x1
jax: 0.10.0
libtpu: 0.0.40
codegen_flags: <defaults>
</compile_context>

<pallas_src>
import jax
import jax.numpy as jnp
from jax.experimental import pallas as pl
from jax.experimental.pallas import tpu as pltpu

N_IN = 6      # len(labels_in)
H1 = 100
H2 = 40
N_OUT = 9


def mlp_kernel(x_ref, w1_ref, b1_ref, w2_ref, b2_ref, w3_ref, b3_ref, o_ref):
    # x_ref: [N_IN, TB]   (batch on lanes)
    # w*:    [out, in]    b*: [out, 1]
    x = x_ref[...]

    h1 = jnp.dot(w1_ref[...], x, preferred_element_type=jnp.float32)
    h1 = jnp.tanh(h1 + b1_ref[...])                     # [H1, TB]

    h2 = jnp.dot(w2_ref[...], h1, preferred_element_type=jnp.float32)
    h2 = jnp.tanh(h2 + b2_ref[...])                     # [H2, TB]

    h3 = jnp.dot(w3_ref[...], h2, preferred_element_type=jnp.float32)
    o_ref[...] = h3 + b3_ref[...]                       # [N_OUT, TB], lane-dense store


def model_torch_forward(x, params, *, block_batch=1024):
    """x: [batch, 6] float32 -> [batch, 9] float32."""
    w1, b1, w2, b2, w3, b3 = params
    batch = x.shape[0]

    # Tile size: multiple of 128, at most block_batch, at least 128.
    tb = min(block_batch, pl.cdiv(batch, 128) * 128)
    padded = pl.cdiv(batch, tb) * tb

    xt = x.T                                            # [N_IN, batch]
    if padded != batch:
        xt = jnp.pad(xt, ((0, 0), (0, padded - batch)))

    grid = (padded // tb,)

    const = lambda shape: pl.BlockSpec(shape, lambda i: (0, 0))

    flops = 2 * padded * (N_IN * H1 + H1 * H2 + H2 * N_OUT)
    transcendentals = padded * (H1 + H2)
    bytes_accessed = 4 * (padded * (N_IN + N_OUT)
                          + N_IN * H1 + H1 + H1 * H2 + H2 + H2 * N_OUT + N_OUT)

    out_t = pl.pallas_call(
        mlp_kernel,
        out_shape=jax.ShapeDtypeStruct((N_OUT, padded), jnp.float32),
        grid=grid,
        in_specs=[
            pl.BlockSpec((N_IN, tb), lambda i: (0, i)),   # x tile, double-buffered
            const((H1, N_IN)), const((H1, 1)),            # resident weights/biases
            const((H2, H1)), const((H2, 1)),
            const((N_OUT, H2)), const((N_OUT, 1)),
        ],
        out_specs=pl.BlockSpec((N_OUT, tb), lambda i: (0, i)),
        compiler_params=pltpu.CompilerParams(
            dimension_semantics=("parallel",)),           # 2x on v7x megacore
        cost_estimate=pl.CostEstimate(
            flops=flops,
            transcendentals=transcendentals,
            bytes_accessed=bytes_accessed),
    )(xt, w1, b1, w2, b2, w3, b3)

    return out_t.T[:batch]                                # [batch, N_OUT]


def init_params(key):
    """Deterministic init mimicking torch.nn.Linear's U(-1/sqrt(fan_in), 1/sqrt(fan_in)).

    Weights are stored PyTorch-style as [out_features, in_features];
    biases as [out_features, 1] for direct broadcast in the kernel.
    """
    ks = jax.random.split(key, 6)

    def linear(kw, kb, fan_in, fan_out):
        bound = 1.0 / jnp.sqrt(jnp.float32(fan_in))
        w = jax.random.uniform(kw, (fan_out, fan_in), jnp.float32, -bound, bound)
        b = jax.random.uniform(kb, (fan_out, 1), jnp.float32, -bound, bound)
        return w, b

    w1, b1 = linear(ks[0], ks[1], N_IN, H1)
    w2, b2 = linear(ks[2], ks[3], H1, H2)
    w3, b3 = linear(ks[4], ks[5], H2, N_OUT)
    return (w1, b1, w2, b2, w3, b3)


def reference_forward(x, params):
    w1, b1, w2, b2, w3, b3 = params
    h = jnp.tanh(x @ w1.T + b1.T)
    h = jnp.tanh(h @ w2.T + b2.T)
    return h @ w3.T + b3.T


if __name__ == "__main__":
    key = jax.random.PRNGKey(0)
    k_params, k_x = jax.random.split(key)

    params = init_params(k_params)

    batch = 8
    x = jax.random.normal(k_x, (batch, N_IN), jnp.float32)

    out = model_torch_forward(x, params)
    out = jax.block_until_ready(out)

    ref = reference_forward(x, params)
    assert out.shape == (batch, N_OUT)
    assert jnp.allclose(out, ref, atol=1e-5, rtol=1e-5)

    # Also exercise a batch that is not a multiple of the tile / 128.
    x2 = jax.random.normal(jax.random.PRNGKey(1), (300, N_IN), jnp.float32)
    out2 = jax.block_until_ready(model_torch_forward(x2, params))
    assert out2.shape == (300, N_OUT)
    assert jnp.allclose(out2, reference_forward(x2, params), atol=1e-5, rtol=1e-5)

    print("KERNEL_OK")
</pallas_src>

<mosaic_0001>
module attributes {stable_mosaic.version = 11 : i64} {
  func.func @mlp_kernel(%arg0: i32, %arg1: memref<6x128xf32, #tpu.memory_space<vmem>>, %arg2: memref<100x6xf32, #tpu.memory_space<vmem>>, %arg3: memref<100x1xf32, #tpu.memory_space<vmem>>, %arg4: memref<40x100xf32, #tpu.memory_space<vmem>>, %arg5: memref<40x1xf32, #tpu.memory_space<vmem>>, %arg6: memref<9x40xf32, #tpu.memory_space<vmem>>, %arg7: memref<9x1xf32, #tpu.memory_space<vmem>>, %arg8: memref<9x128xf32, #tpu.memory_space<vmem>>) attributes {dimension_semantics = [#tpu.dimension_semantics<parallel>], iteration_bounds = array<i64: 1>, scalar_prefetch = 0 : i64, scratch_operands = 0 : i64, tpu.core_type = #tpu.core_type<tc>, window_params = [{transform_indices = @transform_0, window_bounds = array<i64: 6, 128>}, {pipeline_mode = #tpu.pipeline_mode<synchronous>, transform_indices = @transform_1, window_bounds = array<i64: 100, 6>}, {pipeline_mode = #tpu.pipeline_mode<synchronous>, transform_indices = @transform_2, window_bounds = array<i64: 100, 1>}, {pipeline_mode = #tpu.pipeline_mode<synchronous>, transform_indices = @transform_3, window_bounds = array<i64: 40, 100>}, {pipeline_mode = #tpu.pipeline_mode<synchronous>, transform_indices = @transform_4, window_bounds = array<i64: 40, 1>}, {pipeline_mode = #tpu.pipeline_mode<synchronous>, transform_indices = @transform_5, window_bounds = array<i64: 9, 40>}, {pipeline_mode = #tpu.pipeline_mode<synchronous>, transform_indices = @transform_6, window_bounds = array<i64: 9, 1>}, {transform_indices = @transform_7, window_bounds = array<i64: 9, 128>}]} {
    %c0 = arith.constant 0 : index
    %c0_0 = arith.constant 0 : index
    %0 = vector.load %arg1[%c0, %c0_0] : memref<6x128xf32, #tpu.memory_space<vmem>>, vector<6x128xf32>
    %c0_1 = arith.constant 0 : index
    %c0_2 = arith.constant 0 : index
    %1 = vector.load %arg2[%c0_1, %c0_2] : memref<100x6xf32, #tpu.memory_space<vmem>>, vector<100x6xf32>
    %cst = arith.constant dense<0.000000e+00> : vector<100x128xf32>
    %2 = tpu.matmul %1, %0, %cst {dimension_numbers = #tpu.dot_dimension_numbers<[1], [0], [0], [1], [0, 0, 1, 1], [], []>} : vector<100x6xf32>, vector<6x128xf32>, vector<100x128xf32> -> vector<100x128xf32>
    %c0_3 = arith.constant 0 : index
    %c0_4 = arith.constant 0 : index
    %3 = vector.load %arg3[%c0_3, %c0_4] : memref<100x1xf32, #tpu.memory_space<vmem>>, vector<100x1xf32>
    %4 = vector.broadcast %3 : vector<100x1xf32> to vector<100x128xf32>
    %5 = arith.addf %2, %4 : vector<100x128xf32>
    %6 = math.tanh %5 : vector<100x128xf32>
    %c0_5 = arith.constant 0 : index
    %c0_6 = arith.constant 0 : index
    %7 = vector.load %arg4[%c0_5, %c0_6] : memref<40x100xf32, #tpu.memory_space<vmem>>, vector<40x100xf32>
    %cst_7 = arith.constant dense<0.000000e+00> : vector<40x128xf32>
    %8 = tpu.matmul %7, %6, %cst_7 {dimension_numbers = #tpu.dot_dimension_numbers<[1], [0], [0], [1], [0, 0, 1, 1], [], []>} : vector<40x100xf32>, vector<100x128xf32>, vector<40x128xf32> -> vector<40x128xf32>
    %c0_8 = arith.constant 0 : index
    %c0_9 = arith.constant 0 : index
    %9 = vector.load %arg5[%c0_8, %c0_9] : memref<40x1xf32, #tpu.memory_space<vmem>>, vector<40x1xf32>
    %10 = vector.broadcast %9 : vector<40x1xf32> to vector<40x128xf32>
    %11 = arith.addf %8, %10 : vector<40x128xf32>
    %12 = math.tanh %11 : vector<40x128xf32>
    %c0_10 = arith.constant 0 : index
    %c0_11 = arith.constant 0 : index
    %13 = vector.load %arg6[%c0_10, %c0_11] : memref<9x40xf32, #tpu.memory_space<vmem>>, vector<9x40xf32>
    %cst_12 = arith.constant dense<0.000000e+00> : vector<9x128xf32>
    %14 = tpu.matmul %13, %12, %cst_12 {dimension_numbers = #tpu.dot_dimension_numbers<[1], [0], [0], [1], [0, 0, 1, 1], [], []>} : vector<9x40xf32>, vector<40x128xf32>, vector<9x128xf32> -> vector<9x128xf32>
    %c0_13 = arith.constant 0 : index
    %c0_14 = arith.constant 0 : index
    %15 = vector.load %arg7[%c0_13, %c0_14] : memref<9x1xf32, #tpu.memory_space<vmem>>, vector<9x1xf32>
    %16 = vector.broadcast %15 : vector<9x1xf32> to vector<9x128xf32>
    %17 = arith.addf %14, %16 : vector<9x128xf32>
    %c0_15 = arith.constant 0 : index
    %c0_16 = arith.constant 0 : index
    %18 = vector.load %arg8[%c0_15, %c0_16] : memref<9x128xf32, #tpu.memory_space<vmem>>, vector<9x128xf32>
    tpu.vector_store %arg8[%c0_15, %c0_16], %17 {strides = array<i32>} : memref<9x128xf32, #tpu.memory_space<vmem>>, vector<9x128xf32>,
    return
  }
  func.func @transform_0(%arg0: i32) -> (i32, i32) {
    %c0_i32 = arith.constant 0 : i32
    %c0_i32_0 = arith.constant 0 : i32
    return %c0_i32, %arg0 : i32, i32
  }
  func.func @transform_1(%arg0: i32) -> (i32, i32) {
    %c0_i32 = arith.constant 0 : i32
    %c0_i32_0 = arith.constant 0 : i32
    %c0_i32_1 = arith.constant 0 : i32
    return %c0_i32, %c0_i32_0 : i32, i32
  }
  func.func @transform_2(%arg0: i32) -> (i32, i32) {
    %c0_i32 = arith.constant 0 : i32
    %c0_i32_0 = arith.constant 0 : i32
    %c0_i32_1 = arith.constant 0 : i32
    return %c0_i32, %c0_i32_0 : i32, i32
  }
  func.func @transform_3(%arg0: i32) -> (i32, i32) {
    %c0_i32 = arith.constant 0 : i32
    %c0_i32_0 = arith.constant 0 : i32
    %c0_i32_1 = arith.constant 0 : i32
    return %c0_i32, %c0_i32_0 : i32, i32
  }
  func.func @transform_4(%arg0: i32) -> (i32, i32) {
    %c0_i32 = arith.constant 0 : i32
    %c0_i32_0 = arith.constant 0 : i32
    %c0_i32_1 = arith.constant 0 : i32
    return %c0_i32, %c0_i32_0 : i32, i32
  }
  func.func @transform_5(%arg0: i32) -> (i32, i32) {
    %c0_i32 = arith.constant 0 : i32
    %c0_i32_0 = arith.constant 0 : i32
    %c0_i32_1 = arith.constant 0 : i32
    return %c0_i32, %c0_i32_0 : i32, i32
  }
  func.func @transform_6(%arg0: i32) -> (i32, i32) {
    %c0_i32 = arith.constant 0 : i32
    %c0_i32_0 = arith.constant 0 : i32
    %c0_i32_1 = arith.constant 0 : i32
    return %c0_i32, %c0_i32_0 : i32, i32
  }
  func.func @transform_7(%arg0: i32) -> (i32, i32) {
    %c0_i32 = arith.constant 0 : i32
    %c0_i32_0 = arith.constant 0 : i32
    return %c0_i32, %arg0 : i32, i32
  }
}

</mosaic_0001>

<llo_original>
// kernel: tpu_custom_call.1
$region0: #{tpu_custom_call.1}
  #allocation0 [shape = 'u32[]', space=smem, size = 0x4, offset = 0x4, fixed_abs, tag = 'smem constant byte address 0x4 - core index']
  #allocation1 [shape = 'u32[144,128]{1,0:T(1,128)}', space=vmem, size = 0x12000, scoped, tag = 'internal scratch']
  %s0 = inlined_call_operand.vmem [shape: f32[6,128], index: 0, kind: input, shape index: {}]
  %s1 = inlined_call_operand.vmem [shape: f32[100,6], index: 1, kind: input, shape index: {}]
  %s2 = inlined_call_operand.vmem [shape: f32[100,1], index: 2, kind: input, shape index: {}]
  %s3 = inlined_call_operand.vmem [shape: f32[40,100], index: 3, kind: input, shape index: {}]
  %s4 = inlined_call_operand.vmem [shape: f32[40,1], index: 4, kind: input, shape index: {}]
  %s5 = inlined_call_operand.vmem [shape: f32[9,40], index: 5, kind: input, shape index: {}]
  %s6 = inlined_call_operand.vmem [shape: f32[9,1], index: 6, kind: input, shape index: {}]
  %s7 = inlined_call_operand.hbm [shape: f32[9,128], index: 7, kind: output, shape index: {}]
  %s8 = sld [smem:[#allocation0]]
  $region38: #{tpu_custom_call.1} parent=0
    _
  %s10 = ssub.s32 1, %s8
  %s11 = scalar_select 0, %s10, %s8
  $region1: #{tpu_custom_call.1} parent=0
    #allocation2 [shape = 'u8[8192]{0}', space=vmem, size = 0x2000, scoped, tag = 'output window, operand 0, single buffered']
    #allocation3 [shape = 's32[1]{0}', space=sflag, size = 0x4, scoped, tag = 'scoped memory for tpu_custom_call.1']
    %12 = vsyncpa [#allocation3], 0
    // Predicated region
    $region2: #{tpu_custom_call.1} parent=1 // pred_check
      _
    $region3: #{tpu_custom_call.1} parent=1 // pred_check_branch
      %14 = sbr.rel (0) target = $region5
    $region4: #{tpu_custom_call.1} parent=1 // pred_region
      _
    $region5: #{tpu_custom_call.1} parent=1 // pred_fallthru
      _
    // Predicated region
    $region6: #{tpu_custom_call.1} parent=1 // pred_check
      _
    $region7: #{tpu_custom_call.1} parent=1 // pred_check_branch
      %16 = sbr.rel (0) target = $region9
    $region8: #{tpu_custom_call.1} parent=1 // pred_region
      _
    $region9: #{tpu_custom_call.1} parent=1 // pred_fallthru
      _
    // Predicated region
    $region10: #{tpu_custom_call.1} parent=1 // pred_check
      _
    $region11: #{tpu_custom_call.1} parent=1 // pred_check_branch
      %18 = sbr.rel (0) target = $region13
    $region12: #{tpu_custom_call.1} parent=1 // pred_region
      _
    $region13: #{tpu_custom_call.1} parent=1 // pred_fallthru
      _
    // Predicated region
    $region14: #{tpu_custom_call.1} parent=1 // pred_check
      _
    $region15: #{tpu_custom_call.1} parent=1 // pred_check_branch
      %20 = sbr.rel (0) target = $region17
    $region16: #{tpu_custom_call.1} parent=1 // pred_region
      _
    $region17: #{tpu_custom_call.1} parent=1 // pred_fallthru
      _
    // Predicated region
    $region18: #{tpu_custom_call.1} parent=1 // pred_check
      _
    $region19: #{tpu_custom_call.1} parent=1 // pred_check_branch
      %22 = sbr.rel (0) target = $region21
    $region20: #{tpu_custom_call.1} parent=1 // pred_region
      _
    $region21: #{tpu_custom_call.1} parent=1 // pred_fallthru
      _
    // Predicated region
    $region22: #{tpu_custom_call.1} parent=1 // pred_check
      _
    $region23: #{tpu_custom_call.1} parent=1 // pred_check_branch
      %24 = sbr.rel (0) target = $region25
    $region24: #{tpu_custom_call.1} parent=1 // pred_region
      _
    $region25: #{tpu_custom_call.1} parent=1 // pred_fallthru
      _
    // Predicated region
    $region26: #{tpu_custom_call.1} parent=1 // pred_check
      _
    $region27: #{tpu_custom_call.1} parent=1 // pred_check_branch
      %26 = sbr.rel (0) target = $region29
    $region28: #{tpu_custom_call.1} parent=1 // pred_region
      _
    $region29: #{tpu_custom_call.1} parent=1 // pred_fallthru
      _
    %v27 = vld [vmem:[%s0] sm:$0x3f]
    %v28 = vld [vmem:[%s1] sm:$0xff]
    %v29 = vld [vmem:[%s1 + $0x8] sm:$0xff]
    %v30 = vld [vmem:[%s1 + $0x10] sm:$0xff]
    %v31 = vld [vmem:[%s1 + $0x18] sm:$0xff]
    %v32 = vld [vmem:[%s1 + $0x20] sm:$0xff]
    %v33 = vld [vmem:[%s1 + $0x28] sm:$0xff]
    %v34 = vld [vmem:[%s1 + $0x30] sm:$0xff]
    %v35 = vld [vmem:[%s1 + $0x38] sm:$0xff]
    %v36 = vld [vmem:[%s1 + $0x40] sm:$0xff]
    %v37 = vld [vmem:[%s1 + $0x48] sm:$0xff]
    %v38 = vld [vmem:[%s1 + $0x50] sm:$0xff]
    %v39 = vld [vmem:[%s1 + $0x58] sm:$0xff]
    %v40 = vld [vmem:[%s1 + $0x60] sm:$0xf]
    %v41 = vld [vmem:[%s2] sm:$0xff]
    %v42 = vld [vmem:[%s2 + $0x8] sm:$0xff]
    %v43 = vld [vmem:[%s2 + $0x10] sm:$0xff]
    %v44 = vld [vmem:[%s2 + $0x18] sm:$0xff]
    %v45 = vld [vmem:[%s2 + $0x20] sm:$0xff]
    %v46 = vld [vmem:[%s2 + $0x28] sm:$0xff]
    %v47 = vld [vmem:[%s2 + $0x30] sm:$0xff]
    %v48 = vld [vmem:[%s2 + $0x38] sm:$0xff]
    %v49 = vld [vmem:[%s2 + $0x40] sm:$0xff]
    %v50 = vld [vmem:[%s2 + $0x48] sm:$0xff]
    %v51 = vld [vmem:[%s2 + $0x50] sm:$0xff]
    %v52 = vld [vmem:[%s2 + $0x58] sm:$0xff]
    %v53 = vld [vmem:[%s2 + $0x60] sm:$0xf]
    %55 = vset.pattern.permute.xlu0 0
    %56 = vperm.xlu0 %55, %v41
    %v57 = vpop.permute.xlu0 %56
    %60 = vset.pattern.permute.xlu0 0
    %61 = vperm.xlu0 %60, %v42
    %v62 = vpop.permute.xlu0 %61
    %65 = vset.pattern.permute.xlu0 0
    %66 = vperm.xlu0 %65, %v43
    %v67 = vpop.permute.xlu0 %66
    %70 = vset.pattern.permute.xlu0 0
    %71 = vperm.xlu0 %70, %v44
    %v72 = vpop.permute.xlu0 %71
    %75 = vset.pattern.permute.xlu0 0
    %76 = vperm.xlu0 %75, %v45
    %v77 = vpop.permute.xlu0 %76
    %80 = vset.pattern.permute.xlu0 0
    %81 = vperm.xlu0 %80, %v46
    %v82 = vpop.permute.xlu0 %81
    %85 = vset.pattern.permute.xlu0 0
    %86 = vperm.xlu0 %85, %v47
    %v87 = vpop.permute.xlu0 %86
    %90 = vset.pattern.permute.xlu0 0
    %91 = vperm.xlu0 %90, %v48
    %v92 = vpop.permute.xlu0 %91
    %95 = vset.pattern.permute.xlu0 0
    %96 = vperm.xlu0 %95, %v49
    %v97 = vpop.permute.xlu0 %96
    %100 = vset.pattern.permute.xlu0 0
    %101 = vperm.xlu0 %100, %v50
    %v102 = vpop.permute.xlu0 %101
    %105 = vset.pattern.permute.xlu0 0
    %106 = vperm.xlu0 %105, %v51
    %v107 = vpop.permute.xlu0 %106
    %110 = vset.pattern.permute.xlu0 0
    %111 = vperm.xlu0 %110, %v52
    %v112 = vpop.permute.xlu0 %111
    %115 = vset.pattern.permute.xlu0 0
    %116 = vperm.xlu0 %115, %v53
    %v117 = vpop.permute.xlu0 %116
    %vm119 = vcmask 48128
    %v121 = vsel %vm119, %v28, 0
    %v124 = vsel %vm119, %v29, 0
    %v127 = vsel %vm119, %v30, 0
    %v130 = vsel %vm119, %v31, 0
    %v133 = vsel %vm119, %v32, 0
    %v136 = vsel %vm119, %v33, 0
    %v139 = vsel %vm119, %v34, 0
    %v142 = vsel %vm119, %v35, 0
    %v145 = vsel %vm119, %v36, 0
    %v148 = vsel %vm119, %v37, 0
    %v151 = vsel %vm119, %v38, 0
    %v154 = vsel %vm119, %v39, 0
    %v157 = vsel %vm119, %v40, 0
    %vm159 = vcmask 1045504
    %v161 = vsel %vm159, %v27, 0
    %163 = vmatprep.subr.mxu0 0.0
    %164 = vmatpush1.msra.mxu0 %v161
    %165 = vmatprep.subr.mxu0 0.0
    %166 = vmatpush1.msra.mxu0 0.0
    %167 = vmatprep.subr.mxu0 0.0
    %168 = vmatpush1.msra.mxu0 0.0
    %169 = vmatprep.subr.mxu0 0.0
    %170 = vmatpush1.msra.mxu0 0.0
    %171 = vmatprep.subr.mxu0 0.0
    %172 = vmatpush1.msra.mxu0 0.0
    %173 = vmatprep.subr.mxu0 0.0
    %174 = vmatpush1.msra.mxu0 0.0
    %175 = vmatprep.subr.mxu0 0.0
    %176 = vmatpush1.msra.mxu0 0.0
    %177 = vmatprep.subr.mxu0 0.0
    %178 = vmatpush1.msra.mxu0 0.0
    %179 = vmatprep.subr.mxu0 0.0
    %180 = vmatpush1.msra.mxu0 0.0
    %181 = vmatprep.subr.mxu0 0.0
    %182 = vmatpush1.msra.mxu0 0.0
    %183 = vmatprep.subr.mxu0 0.0
    %184 = vmatpush1.msra.mxu0 0.0
    %185 = vmatprep.subr.mxu0 0.0
    %186 = vmatpush1.msra.mxu0 0.0
    %187 = vmatprep.subr.mxu0 0.0
    %188 = vmatpush1.msra.mxu0 0.0
    %189 = vmatprep.subr.mxu0 0.0
    %190 = vmatpush1.msra.mxu0 0.0
    %191 = vmatprep.subr.mxu0 0.0
    %192 = vmatpush1.msra.mxu0 0.0
    %193 = vmatprep.subr.mxu0 0.0
    %194 = vmatpush1.msra.mxu0 0.0
    %195 = vmatprep.subr.mxu0 0.0
    %196 = vmatpush1.msra.mxu0 0.0
    %197 = vmatprep.subr.mxu0 0.0
    %198 = vmatpush1.msra.mxu0 0.0
    %199 = vmatprep.subr.mxu0 0.0
    %200 = vmatpush1.msra.mxu0 0.0
    %201 = vmatprep.subr.mxu0 0.0
    %202 = vmatpush1.msra.mxu0 0.0
    %203 = vmatprep.subr.mxu0 0.0
    %204 = vmatpush1.msra.mxu0 0.0
    %205 = vmatprep.subr.mxu0 0.0
    %206 = vmatpush1.msra.mxu0 0.0
    %207 = vmatprep.subr.mxu0 0.0
    %208 = vmatpush1.msra.mxu0 0.0
    %209 = vmatprep.subr.mxu0 0.0
    %210 = vmatpush1.msra.mxu0 0.0
    %211 = vmatprep.subr.mxu0 0.0
    %212 = vmatpush1.msra.mxu0 0.0
    %213 = vmatprep.subr.mxu0 0.0
    %214 = vmatpush1.msra.mxu0 0.0
    %215 = vmatprep.subr.mxu0 0.0
    %216 = vmatpush1.msra.mxu0 0.0
    %217 = vmatprep.subr.mxu0 0.0
    %218 = vmatpush1.msra.mxu0 0.0
    %219 = vmatprep.subr.mxu0 0.0
    %220 = vmatpush1.msra.mxu0 0.0
    %221 = vmatprep.subr.mxu0 0.0
    %222 = vmatpush1.msra.mxu0 0.0
    %223 = vmatprep.subr.mxu0 0.0
    %224 = vmatpush1.msra.mxu0 0.0
    %225 = vmatprep.subr.mxu0 0.0
    %226 = vmatpush1.msra.mxu0 0.0
    %227 = vmatprep.mubr.f32.mxu0 0.0
    %228 = vmatmul.mubr.f32.gmra.mrb[0].mxu0 %v121
    %v229 = vpop.f32.mrb[0].mxu0
    %v230 = vadd.f32 %v57, %v229
    %v231 = vpop.f32.mrb[0].mxu0
    %232 = vmatprep.mubr.f32.mxu0 0.0
    %233 = vmatmul.mubr.f32.gmra.mrb[0].mxu0 %v124
    %v234 = vpop.f32.mrb[0].mxu0
    %v235 = vadd.f32 %v62, %v234
    %v236 = vpop.f32.mrb[0].mxu0
    %237 = vmatprep.mubr.f32.mxu0 0.0
    %238 = vmatmul.mubr.f32.gmra.mrb[0].mxu0 %v127
    %v239 = vpop.f32.mrb[0].mxu0
    %v240 = vadd.f32 %v67, %v239
    %v241 = vpop.f32.mrb[0].mxu0
    %242 = vmatprep.mubr.f32.mxu0 0.0
    %243 = vmatmul.mubr.f32.gmra.mrb[0].mxu0 %v130
    %v244 = vpop.f32.mrb[0].mxu0
    %v245 = vadd.f32 %v72, %v244
    %v246 = vpop.f32.mrb[0].mxu0
    %247 = vmatprep.mubr.f32.mxu0 0.0
    %248 = vmatmul.mubr.f32.gmra.mrb[0].mxu0 %v133
    %v249 = vpop.f32.mrb[0].mxu0
    %v250 = vadd.f32 %v77, %v249
    %v251 = vpop.f32.mrb[0].mxu0
    %252 = vmatprep.mubr.f32.mxu0 0.0
    %253 = vmatmul.mubr.f32.gmra.mrb[0].mxu0 %v136
    %v254 = vpop.f32.mrb[0].mxu0
    %v255 = vadd.f32 %v82, %v254
    %v256 = vpop.f32.mrb[0].mxu0
    %257 = vmatprep.mubr.f32.mxu0 0.0
    %258 = vmatmul.mubr.f32.gmra.mrb[0].mxu0 %v139
    %v259 = vpop.f32.mrb[0].mxu0
    %v260 = vadd.f32 %v87, %v259
    %v261 = vpop.f32.mrb[0].mxu0
    %262 = vmatprep.mubr.f32.mxu0 0.0
    %263 = vmatmul.mubr.f32.gmra.mrb[0].mxu0 %v142
    %v264 = vpop.f32.mrb[0].mxu0
    %v265 = vadd.f32 %v92, %v264
    %v266 = vpop.f32.mrb[0].mxu0
    %267 = vmatprep.mubr.f32.mxu0 0.0
    %268 = vmatmul.mubr.f32.gmra.mrb[0].mxu0 %v145
    %v269 = vpop.f32.mrb[0].mxu0
    %v270 = vadd.f32 %v97, %v269
    %v271 = vpop.f32.mrb[0].mxu0
    %272 = vmatprep.mubr.f32.mxu0 0.0
    %273 = vmatmul.mubr.f32.gmra.mrb[0].mxu0 %v148
    %v274 = vpop.f32.mrb[0].mxu0
    %v275 = vadd.f32 %v102, %v274
    %v276 = vpop.f32.mrb[0].mxu0
    %277 = vmatprep.mubr.f32.mxu0 0.0
    %278 = vmatmul.mubr.f32.gmra.mrb[0].mxu0 %v151
    %v279 = vpop.f32.mrb[0].mxu0
    %v280 = vadd.f32 %v107, %v279
    %v281 = vpop.f32.mrb[0].mxu0
    %282 = vmatprep.mubr.f32.mxu0 0.0
    %283 = vmatmul.mubr.f32.gmra.mrb[0].mxu0 %v154
    %v284 = vpop.f32.mrb[0].mxu0
    %v285 = vadd.f32 %v112, %v284
    %v286 = vpop.f32.mrb[0].mxu0
    %287 = vmatprep.mubr.f32.mxu0 0.0
    %288 = vmatmul.mubr.f32.gmra.mrb[0].mxu0 %v157
    %v289 = vpop.f32.mrb[0].mxu0
    %v290 = vadd.f32 %v117, %v289
    %v291 = vpop.f32.mrb[0].mxu0
    %292 = vdwg.mxu0
    %v293 = vtanh.pop %v230
    %v294 = vtanh.pop %v235
    %v295 = vtanh.pop %v240
    %v296 = vtanh.pop %v245
    %v297 = vtanh.pop %v250
    %v298 = vtanh.pop %v255
    %v299 = vtanh.pop %v260
    %v300 = vtanh.pop %v265
    %v301 = vtanh.pop %v270
    %v302 = vtanh.pop %v275
    %v303 = vtanh.pop %v280
    %v304 = vtanh.pop %v285
    %v305 = vtanh.pop %v290
    %v306 = vld [vmem:[%s3] sm:$0xff]
    %v307 = vld [vmem:[%s3 + $0x8] sm:$0xff]
    %v308 = vld [vmem:[%s3 + $0x10] sm:$0xff]
    %v309 = vld [vmem:[%s3 + $0x18] sm:$0xff]
    %v310 = vld [vmem:[%s3 + $0x20] sm:$0xff]
    %v311 = vld [vmem:[%s4] sm:$0xff]
    %v312 = vld [vmem:[%s4 + $0x8] sm:$0xff]
    %v313 = vld [vmem:[%s4 + $0x10] sm:$0xff]
    %v314 = vld [vmem:[%s4 + $0x18] sm:$0xff]
    %v315 = vld [vmem:[%s4 + $0x20] sm:$0xff]
    %317 = vset.pattern.permute.xlu0 0
    %318 = vperm.xlu0 %317, %v311
    %v319 = vpop.permute.xlu0 %318
    %322 = vset.pattern.permute.xlu0 0
    %323 = vperm.xlu0 %322, %v312
    %v324 = vpop.permute.xlu0 %323
    %327 = vset.pattern.permute.xlu0 0
    %328 = vperm.xlu0 %327, %v313
    %v329 = vpop.permute.xlu0 %328
    %332 = vset.pattern.permute.xlu0 0
    %333 = vperm.xlu0 %332, %v314
    %v334 = vpop.permute.xlu0 %333
    %337 = vset.pattern.permute.xlu0 0
    %338 = vperm.xlu0 %337, %v315
    %v339 = vpop.permute.xlu0 %338
    %vm341 = vcmask 818176
    %v343 = vsel %vm341, %v306, 0
    %v346 = vsel %vm341, %v307, 0
    %v349 = vsel %vm341, %v308, 0
    %v352 = vsel %vm341, %v309, 0
    %v355 = vsel %vm341, %v310, 0
    %vm357 = vcmask 1043456
    %v359 = vsel %vm357, %v305, 0
    %361 = vmatprep.subr.mxu0 0.0
    %362 = vmatpush1.msra.mxu0 %v293
    %363 = vmatprep.subr.mxu0 0.0
    %364 = vmatpush1.msra.mxu0 %v294
    %365 = vmatprep.subr.mxu0 0.0
    %366 = vmatpush1.msra.mxu0 %v295
    %367 = vmatprep.subr.mxu0 0.0
    %368 = vmatpush1.msra.mxu0 %v296
    %369 = vmatprep.subr.mxu0 0.0
    %370 = vmatpush1.msra.mxu0 %v297
    %371 = vmatprep.subr.mxu0 0.0
    %372 = vmatpush1.msra.mxu0 %v298
    %373 = vmatprep.subr.mxu0 0.0
    %374 = vmatpush1.msra.mxu0 %v299
    %375 = vmatprep.subr.mxu0 0.0
    %376 = vmatpush1.msra.mxu0 %v300
    %377 = vmatprep.subr.mxu0 0.0
    %378 = vmatpush1.msra.mxu0 %v301
    %379 = vmatprep.subr.mxu0 0.0
    %380 = vmatpush1.msra.mxu0 %v302
    %381 = vmatprep.subr.mxu0 0.0
    %382 = vmatpush1.msra.mxu0 %v303
    %383 = vmatprep.subr.mxu0 0.0
    %384 = vmatpush1.msra.mxu0 %v304
    %385 = vmatprep.subr.mxu0 0.0
    %386 = vmatpush1.msra.mxu0 %v359
    %387 = vmatprep.subr.mxu0 0.0
    %388 = vmatpush1.msra.mxu0 0.0
    %389 = vmatprep.subr.mxu0 0.0
    %390 = vmatpush1.msra.mxu0 0.0
    %391 = vmatprep.subr.mxu0 0.0
    %392 = vmatpush1.msra.mxu0 0.0
    %393 = vmatprep.subr.mxu0 0.0
    %394 = vmatpush1.msra.mxu0 0.0
    %395 = vmatprep.subr.mxu0 0.0
    %396 = vmatpush1.msra.mxu0 0.0
    %397 = vmatprep.subr.mxu0 0.0
    %398 = vmatpush1.msra.mxu0 0.0
    %399 = vmatprep.subr.mxu0 0.0
    %400 = vmatpush1.msra.mxu0 0.0
    %401 = vmatprep.subr.mxu0 0.0
    %402 = vmatpush1.msra.mxu0 0.0
    %403 = vmatprep.subr.mxu0 0.0
    %404 = vmatpush1.msra.mxu0 0.0
    %405 = vmatprep.subr.mxu0 0.0
    %406 = vmatpush1.msra.mxu0 0.0
    %407 = vmatprep.subr.mxu0 0.0
    %408 = vmatpush1.msra.mxu0 0.0
    %409 = vmatprep.subr.mxu0 0.0
    %410 = vmatpush1.msra.mxu0 0.0
    %411 = vmatprep.subr.mxu0 0.0
    %412 = vmatpush1.msra.mxu0 0.0
    %413 = vmatprep.subr.mxu0 0.0
    %414 = vmatpush1.msra.mxu0 0.0
    %415 = vmatprep.subr.mxu0 0.0
    %416 = vmatpush1.msra.mxu0 0.0
    %417 = vmatprep.subr.mxu0 0.0
    %418 = vmatpush1.msra.mxu0 0.0
    %419 = vmatprep.subr.mxu0 0.0
    %420 = vmatpush1.msra.mxu0 0.0
    %421 = vmatprep.subr.mxu0 0.0
    %422 = vmatpush1.msra.mxu0 0.0
    %423 = vmatprep.subr.mxu0 0.0
    %424 = vmatpush1.msra.mxu0 0.0
    %425 = vmatprep.mubr.f32.mxu0 0.0
    %426 = vmatmul.mubr.f32.gmra.mrb[0].mxu0 %v343
    %v427 = vpop.f32.mrb[0].mxu0
    %v428 = vadd.f32 %v319, %v427
    %v429 = vpop.f32.mrb[0].mxu0
    %430 = vmatprep.mubr.f32.mxu0 0.0
    %431 = vmatmul.mubr.f32.gmra.mrb[0].mxu0 %v346
    %v432 = vpop.f32.mrb[0].mxu0
    %v433 = vadd.f32 %v324, %v432
    %v434 = vpop.f32.mrb[0].mxu0
    %435 = vmatprep.mubr.f32.mxu0 0.0
    %436 = vmatmul.mubr.f32.gmra.mrb[0].mxu0 %v349
    %v437 = vpop.f32.mrb[0].mxu0
    %v438 = vadd.f32 %v329, %v437
    %v439 = vpop.f32.mrb[0].mxu0
    %440 = vmatprep.mubr.f32.mxu0 0.0
    %441 = vmatmul.mubr.f32.gmra.mrb[0].mxu0 %v352
    %v442 = vpop.f32.mrb[0].mxu0
    %v443 = vadd.f32 %v334, %v442
    %v444 = vpop.f32.mrb[0].mxu0
    %445 = vmatprep.mubr.f32.mxu0 0.0
    %446 = vmatmul.mubr.f32.gmra.mrb[0].mxu0 %v355
    %v447 = vpop.f32.mrb[0].mxu0
    %v448 = vadd.f32 %v339, %v447
    %v449 = vpop.f32.mrb[0].mxu0
    %450 = vdwg.mxu0
    %v451 = vtanh.pop %v428
    %v452 = vtanh.pop %v433
    %v453 = vtanh.pop %v438
    %v454 = vtanh.pop %v443
    %v455 = vtanh.pop %v448
    %v456 = vld [vmem:[%s5] sm:$0xff]
    %v457 = vld [vmem:[%s5 + $0x8] sm:$0x1]
    %v458 = vld [vmem:[%s6] sm:$0xff]
    %v459 = vld [vmem:[%s6 + $0x8] sm:$0x1]
    %461 = vset.pattern.permute.xlu0 0
    %462 = vperm.xlu0 %461, %v458
    %v463 = vpop.permute.xlu0 %462
    %466 = vset.pattern.permute.xlu0 0
    %467 = vperm.xlu0 %466, %v459
    %v468 = vpop.permute.xlu0 %467
    %vm470 = vcmask 326656
    %v472 = vsel %vm470, %v456, 0
    %v475 = vsel %vm470, %v457, 0
    %477 = vmatprep.subr.mxu0 0.0
    %478 = vmatpush1.msra.mxu0 %v451
    %479 = vmatprep.subr.mxu0 0.0
    %480 = vmatpush1.msra.mxu0 %v452
    %481 = vmatprep.subr.mxu0 0.0
    %482 = vmatpush1.msra.mxu0 %v453
    %483 = vmatprep.subr.mxu0 0.0
    %484 = vmatpush1.msra.mxu0 %v454
    %485 = vmatprep.subr.mxu0 0.0
    %486 = vmatpush1.msra.mxu0 %v455
    %487 = vmatprep.subr.mxu0 0.0
    %488 = vmatpush1.msra.mxu0 0.0
    %489 = vmatprep.subr.mxu0 0.0
    %490 = vmatpush1.msra.mxu0 0.0
    %491 = vmatprep.subr.mxu0 0.0
    %492 = vmatpush1.msra.mxu0 0.0
    %493 = vmatprep.subr.mxu0 0.0
    %494 = vmatpush1.msra.mxu0 0.0
    %495 = vmatprep.subr.mxu0 0.0
    %496 = vmatpush1.msra.mxu0 0.0
    %497 = vmatprep.subr.mxu0 0.0
    %498 = vmatpush1.msra.mxu0 0.0
    %499 = vmatprep.subr.mxu0 0.0
    %500 = vmatpush1.msra.mxu0 0.0
    %501 = vmatprep.subr.mxu0 0.0
    %502 = vmatpush1.msra.mxu0 0.0
    %503 = vmatprep.subr.mxu0 0.0
    %504 = vmatpush1.msra.mxu0 0.0
    %505 = vmatprep.subr.mxu0 0.0
    %506 = vmatpush1.msra.mxu0 0.0
    %507 = vmatprep.subr.mxu0 0.0
    %508 = vmatpush1.msra.mxu0 0.0
    %509 = vmatprep.subr.mxu0 0.0
    %510 = vmatpush1.msra.mxu0 0.0
    %511 = vmatprep.subr.mxu0 0.0
    %512 = vmatpush1.msra.mxu0 0.0
    %513 = vmatprep.subr.mxu0 0.0
    %514 = vmatpush1.msra.mxu0 0.0
    %515 = vmatprep.subr.mxu0 0.0
    %516 = vmatpush1.msra.mxu0 0.0
    %517 = vmatprep.subr.mxu0 0.0
    %518 = vmatpush1.msra.mxu0 0.0
    %519 = vmatprep.subr.mxu0 0.0
    %520 = vmatpush1.msra.mxu0 0.0
    %521 = vmatprep.subr.mxu0 0.0
    %522 = vmatpush1.msra.mxu0 0.0
    %523 = vmatprep.subr.mxu0 0.0
    %524 = vmatpush1.msra.mxu0 0.0
    %525 = vmatprep.subr.mxu0 0.0
    %526 = vmatpush1.msra.mxu0 0.0
    %527 = vmatprep.subr.mxu0 0.0
    %528 = vmatpush1.msra.mxu0 0.0
    %529 = vmatprep.subr.mxu0 0.0
    %530 = vmatpush1.msra.mxu0 0.0
    %531 = vmatprep.subr.mxu0 0.0
    %532 = vmatpush1.msra.mxu0 0.0
    %533 = vmatprep.subr.mxu0 0.0
    %534 = vmatpush1.msra.mxu0 0.0
    %535 = vmatprep.subr.mxu0 0.0
    %536 = vmatpush1.msra.mxu0 0.0
    %537 = vmatprep.subr.mxu0 0.0
    %538 = vmatpush1.msra.mxu0 0.0
    %539 = vmatprep.subr.mxu0 0.0
    %540 = vmatpush1.msra.mxu0 0.0
    %541 = vmatprep.mubr.f32.mxu0 0.0
    %542 = vmatmul.mubr.f32.gmra.mrb[0].mxu0 %v472
    %v543 = vpop.f32.mrb[0].mxu0
    %v544 = vadd.f32 %v463, %v543
    %v545 = vpop.f32.mrb[0].mxu0
    %546 = vmatprep.mubr.f32.mxu0 0.0
    %547 = vmatmul.mubr.f32.gmra.mrb[0].mxu0 %v475
    %v548 = vpop.f32.mrb[0].mxu0
    %v549 = vadd.f32 %v468, %v548
    %v550 = vpop.f32.mrb[0].mxu0
    %551 = vdwg.mxu0
    %552 = vst [vmem:[#allocation2] sm:$0xff] %v544
    %553 = vst [vmem:[#allocation2 + $0x8] sm:$0x1] %v549
    // Predicated region
    $region30: #{tpu_custom_call.1} parent=1 // pred_check
      _
    $region31: #{tpu_custom_call.1} parent=1 // pred_check_branch
      %555 = sbr.rel (0) target = $region33
    $region32: #{tpu_custom_call.1} parent=1 // pred_region
      %s557 = ssub.s32 256, 256
      %558 = vsyncadd [#allocation3], %s557
      %s559 = sshll.u32 [#allocation2], 4
      %s560 = int_to_ptr.vmem [resolvable:$true] %s559
      %565 = dma.vmem_to_hbm [thread:$0]  %s560, 256, %s7, [#allocation3], 128, 128, 8
    $region33: #{tpu_custom_call.1} parent=1 // pred_fallthru
      _
    // Predicated region
    $region34: #{tpu_custom_call.1} parent=1 // pred_check
      _
    $region35: #{tpu_custom_call.1} parent=1 // pred_check_branch
      %567 = sbr.rel (0) target = $region37
    $region36: #{tpu_custom_call.1} parent=1 // pred_region
      %568 = dma.done [#allocation3], 256
    $region37: #{tpu_custom_call.1} parent=1 // pred_fallthru
      _
    %569 = vsyncpa [#allocation3], 1

</llo_original>
